<compile_context>
chip_gen: v6e
topology: v6e:2x2x1
jax: 0.10.0
libtpu: 0.0.40
codegen_flags: <defaults>
</compile_context>

<pallas_src>
import functools

import jax
import jax.numpy as jnp
from jax.experimental import pallas as pl
from jax.experimental.pallas import tpu as pltpu

HIDDEN = 256
EPS = 1e-5
N_VEC_ROWS = 12  # b1, br, g1, be1, b2, g2, be2, b3, g3, be3, w4_row, b4_row


def _round_up(x, m):
    return (x + m - 1) // m * m


def _layernorm(h, gamma, beta):
    # Single-pass LN: E[x] and E[x^2]; rsqrt goes to the EUP (free slot here).
    mu = jnp.mean(h, axis=-1, keepdims=True)
    m2 = jnp.mean(h * h, axis=-1, keepdims=True)
    var = m2 - mu * mu
    return (h - mu) * jax.lax.rsqrt(var + EPS) * gamma + beta


def critic_kernel(state_ref, w1r_ref, w2_ref, w3_ref, vec_ref, out_ref):
    vec = vec_ref[...]                        # (12, 256) f32, VMEM-resident
    b1, br = vec[0:1], vec[1:2]
    g1, be1 = vec[2:3], vec[3:4]
    b2, g2, be2 = vec[4:5], vec[5:6], vec[6:7]
    b3, g3, be3 = vec[7:8], vec[8:9], vec[9:10]
    w4_row = vec[10:11]                       # (1, 256)
    b4 = vec[11:12, 0:1]                      # (1, 1)

    x = state_ref[...].astype(jnp.bfloat16)   # bf16 MXU operand, cast on the VPU

    # fc1 and residual fused into one K=state_dim matmul: [w1 | wr] is (D, 512).
    h1r = jnp.dot(x, w1r_ref[...], preferred_element_type=jnp.float32)  # (TB, 512) f32
    h = h1r[:, :HIDDEN] + b1
    res = h1r[:, HIDDEN:] + br

    # fc1 -> ln1 -> relu
    h = jnp.maximum(_layernorm(h, g1, be1), 0.0)

    # fc2 -> ln2 -> relu  (dropout identity in eval)
    h = jnp.dot(h.astype(jnp.bfloat16), w2_ref[...],
                preferred_element_type=jnp.float32) + b2
    h = jnp.maximum(_layernorm(h, g2, be2), 0.0)

    # fc3 -> ln3 -> relu  (dropout identity in eval)
    h = jnp.dot(h.astype(jnp.bfloat16), w3_ref[...],
                preferred_element_type=jnp.float32) + b3
    h = jnp.maximum(_layernorm(h, g3, be3), 0.0)

    # residual add
    h = h + res

    # fc4 (width-1 output): VPU multiply + XLU lane reduction, no N=1 MXU push.
    v = jnp.sum(h * w4_row, axis=-1, keepdims=True) + b4
    out_ref[...] = v.astype(out_ref.dtype)


def critic_forward(state, kparams, *, tb=512):
    B, D = state.shape
    w1r, w2, w3, vec = kparams["w1r"], kparams["w2"], kparams["w3"], kparams["vec"]

    # Batch tile: multiple of 8 (sublane), capped at `tb`; pad batch to a tile multiple.
    tb_eff = min(tb, _round_up(B, 8))
    b_pad = _round_up(B, tb_eff)
    if b_pad != B:
        state = jnp.pad(state, ((0, b_pad - B), (0, 0)))
    grid = (b_pad // tb_eff,)

    out = pl.pallas_call(
        critic_kernel,
        out_shape=jax.ShapeDtypeStruct((b_pad, 1), jnp.float32),
        grid=grid,
        in_specs=[
            pl.BlockSpec((tb_eff, D), lambda i: (i, 0)),           # state tile (pipelined)
            pl.BlockSpec((D, 2 * HIDDEN), lambda i: (0, 0)),       # [w1|wr] bf16, resident
            pl.BlockSpec((HIDDEN, HIDDEN), lambda i: (0, 0)),      # w2 bf16, resident
            pl.BlockSpec((HIDDEN, HIDDEN), lambda i: (0, 0)),      # w3 bf16, resident
            pl.BlockSpec((N_VEC_ROWS, HIDDEN), lambda i: (0, 0)),  # packed biases/LN/w4
        ],
        out_specs=pl.BlockSpec((tb_eff, 1), lambda i: (i, 0)),
        compiler_params=pltpu.CompilerParams(
            dimension_semantics=("parallel",)),  # megacore sharding on v7x
    )(state, w1r, w2, w3, vec)
    return out[:B]


def make_params(key, state_dim):
    """Deterministic parameter init mirroring the PyTorch __init__ (orthogonal + zeros)."""
    relu_gain = jnp.sqrt(2.0)  # nn.init.calculate_gain('relu')
    orth = jax.nn.initializers.orthogonal
    ks = jax.random.split(key, 6)
    # PyTorch Linear weight is (out, in); we store the transpose (in, out).
    w1 = orth(relu_gain)(ks[0], (HIDDEN, state_dim), jnp.float32).T
    w2 = orth(relu_gain)(ks[1], (HIDDEN, HIDDEN), jnp.float32).T
    w3 = orth(relu_gain)(ks[2], (HIDDEN, HIDDEN), jnp.float32).T
    w4 = orth(1.0)(ks[3], (1, HIDDEN), jnp.float32).T
    # residual_layer uses PyTorch's default (kaiming-uniform) init; any deterministic
    # init is fine for this synthetic test — use a small uniform.
    bound = 1.0 / jnp.sqrt(state_dim)
    wr = jax.random.uniform(ks[4], (state_dim, HIDDEN), jnp.float32, -bound, bound)
    br = jax.random.uniform(ks[5], (1, HIDDEN), jnp.float32, -bound, bound)
    zeros_h = jnp.zeros((1, HIDDEN), jnp.float32)
    ones_h = jnp.ones((1, HIDDEN), jnp.float32)
    return dict(
        w1=w1, b1=zeros_h, g1=ones_h, be1=zeros_h,
        w2=w2, b2=zeros_h, g2=ones_h, be2=zeros_h,
        w3=w3, b3=zeros_h, g3=ones_h, be3=zeros_h,
        wr=wr, br=br,
        w4=w4, b4=jnp.zeros((1, 1), jnp.float32),
    )


def pack_params(p):
    """Pack logical params into kernel layout: bf16 matmul weights + one (12,256) vector block."""
    w1r = jnp.concatenate([p["w1"], p["wr"]], axis=1).astype(jnp.bfloat16)  # (D, 512)
    b4_row = jnp.zeros((1, HIDDEN), jnp.float32).at[0, 0].set(p["b4"][0, 0])
    vec = jnp.concatenate(
        [
            p["b1"], p["br"], p["g1"], p["be1"],
            p["b2"], p["g2"], p["be2"],
            p["b3"], p["g3"], p["be3"],
            p["w4"].T,       # fc4 weight as a (1, 256) row
            b4_row,          # fc4 bias stored at [11, 0]
        ],
        axis=0,
    )                          # (12, 256) f32
    return dict(
        w1r=w1r,
        w2=p["w2"].astype(jnp.bfloat16),
        w3=p["w3"].astype(jnp.bfloat16),
        vec=vec,
    )


def critic_reference(state, p):
    """Plain-JAX reference mirroring the kernel's bf16 MXU path (f32 accumulation)."""
    def ln(h, g, b):
        mu = jnp.mean(h, axis=-1, keepdims=True)
        var = jnp.mean((h - mu) ** 2, axis=-1, keepdims=True)
        return (h - mu) / jnp.sqrt(var + EPS) * g + b

    def mm(a, w):
        return jnp.dot(a.astype(jnp.bfloat16), w.astype(jnp.bfloat16),
                       preferred_element_type=jnp.float32)

    x = jax.nn.relu(ln(mm(state, p["w1"]) + p["b1"], p["g1"], p["be1"]))
    x = jax.nn.relu(ln(mm(x, p["w2"]) + p["b2"], p["g2"], p["be2"]))
    x = jax.nn.relu(ln(mm(x, p["w3"]) + p["b3"], p["g3"], p["be3"]))
    res = mm(state, p["wr"]) + p["br"]
    return (x + res) @ p["w4"] + p["b4"]


if __name__ == "__main__":
    B, STATE_DIM = 8, 16
    key = jax.random.PRNGKey(0)
    k_param, k_state = jax.random.split(key)
    params = make_params(k_param, STATE_DIM)
    kparams = pack_params(params)
    state = jax.random.normal(k_state, (B, STATE_DIM), jnp.float32)

    fwd = jax.jit(functools.partial(critic_forward, kparams=kparams))
    v = jax.block_until_ready(fwd(state))

    v_ref = critic_reference(state, params)
    assert v.shape == (B, 1)
    assert jnp.allclose(v, v_ref, atol=2e-3, rtol=2e-3), (v, v_ref)
    print("KERNEL_OK")
</pallas_src>

<mosaic_0001>
module attributes {stable_mosaic.version = 11 : i64} {
  func.func @critic_kernel(%arg0: i32, %arg1: memref<8x16xf32, #tpu.memory_space<vmem>>, %arg2: memref<16x512xbf16, #tpu.memory_space<vmem>>, %arg3: memref<256x256xbf16, #tpu.memory_space<vmem>>, %arg4: memref<256x256xbf16, #tpu.memory_space<vmem>>, %arg5: memref<12x256xf32, #tpu.memory_space<vmem>>, %arg6: memref<8x1xf32, #tpu.memory_space<vmem>>) attributes {dimension_semantics = [#tpu.dimension_semantics<parallel>], iteration_bounds = array<i64: 1>, scalar_prefetch = 0 : i64, scratch_operands = 0 : i64, tpu.core_type = #tpu.core_type<tc>, window_params = [{transform_indices = @transform_0, window_bounds = array<i64: 8, 16>}, {pipeline_mode = #tpu.pipeline_mode<synchronous>, transform_indices = @transform_1, window_bounds = array<i64: 16, 512>}, {pipeline_mode = #tpu.pipeline_mode<synchronous>, transform_indices = @transform_2, window_bounds = array<i64: 256, 256>}, {pipeline_mode = #tpu.pipeline_mode<synchronous>, transform_indices = @transform_3, window_bounds = array<i64: 256, 256>}, {pipeline_mode = #tpu.pipeline_mode<synchronous>, transform_indices = @transform_4, window_bounds = array<i64: 12, 256>}, {transform_indices = @transform_5, window_bounds = array<i64: 8, 1>}]} {
    %c0 = arith.constant 0 : index
    %c0_0 = arith.constant 0 : index
    %0 = vector.load %arg5[%c0, %c0_0] : memref<12x256xf32, #tpu.memory_space<vmem>>, vector<12x256xf32>
    %1 = vector.extract_strided_slice %0 {offsets = [0, 0], sizes = [1, 256], strides = [1, 1]} : vector<12x256xf32> to vector<1x256xf32>
    %2 = vector.extract_strided_slice %0 {offsets = [1, 0], sizes = [1, 256], strides = [1, 1]} : vector<12x256xf32> to vector<1x256xf32>
    %3 = vector.extract_strided_slice %0 {offsets = [2, 0], sizes = [1, 256], strides = [1, 1]} : vector<12x256xf32> to vector<1x256xf32>
    %4 = vector.extract_strided_slice %0 {offsets = [3, 0], sizes = [1, 256], strides = [1, 1]} : vector<12x256xf32> to vector<1x256xf32>
    %5 = vector.extract_strided_slice %0 {offsets = [4, 0], sizes = [1, 256], strides = [1, 1]} : vector<12x256xf32> to vector<1x256xf32>
    %6 = vector.extract_strided_slice %0 {offsets = [5, 0], sizes = [1, 256], strides = [1, 1]} : vector<12x256xf32> to vector<1x256xf32>
    %7 = vector.extract_strided_slice %0 {offsets = [6, 0], sizes = [1, 256], strides = [1, 1]} : vector<12x256xf32> to vector<1x256xf32>
    %8 = vector.extract_strided_slice %0 {offsets = [7, 0], sizes = [1, 256], strides = [1, 1]} : vector<12x256xf32> to vector<1x256xf32>
    %9 = vector.extract_strided_slice %0 {offsets = [8, 0], sizes = [1, 256], strides = [1, 1]} : vector<12x256xf32> to vector<1x256xf32>
    %10 = vector.extract_strided_slice %0 {offsets = [9, 0], sizes = [1, 256], strides = [1, 1]} : vector<12x256xf32> to vector<1x256xf32>
    %11 = vector.extract_strided_slice %0 {offsets = [10, 0], sizes = [1, 256], strides = [1, 1]} : vector<12x256xf32> to vector<1x256xf32>
    %12 = vector.extract_strided_slice %0 {offsets = [11, 0], sizes = [1, 1], strides = [1, 1]} : vector<12x256xf32> to vector<1x1xf32>
    %c0_1 = arith.constant 0 : index
    %c0_2 = arith.constant 0 : index
    %13 = vector.load %arg1[%c0_1, %c0_2] : memref<8x16xf32, #tpu.memory_space<vmem>>, vector<8x16xf32>
    %14 = arith.truncf %13 : vector<8x16xf32> to vector<8x16xbf16>
    %c0_3 = arith.constant 0 : index
    %c0_4 = arith.constant 0 : index
    %15 = vector.load %arg2[%c0_3, %c0_4] : memref<16x512xbf16, #tpu.memory_space<vmem>>, vector<16x512xbf16>
    %cst = arith.constant dense<0.000000e+00> : vector<8x512xf32>
    %16 = tpu.matmul %14, %15, %cst {dimension_numbers = #tpu.dot_dimension_numbers<[1], [0], [0], [1], [0, 0, 1, 1], [], []>} : vector<8x16xbf16>, vector<16x512xbf16>, vector<8x512xf32> -> vector<8x512xf32>
    %17 = vector.extract_strided_slice %16 {offsets = [0, 0], sizes = [8, 256], strides = [1, 1]} : vector<8x512xf32> to vector<8x256xf32>
    %18 = vector.broadcast %1 : vector<1x256xf32> to vector<8x256xf32>
    %19 = arith.addf %17, %18 : vector<8x256xf32>
    %20 = vector.extract_strided_slice %16 {offsets = [0, 256], sizes = [8, 256], strides = [1, 1]} : vector<8x512xf32> to vector<8x256xf32>
    %21 = vector.broadcast %2 : vector<1x256xf32> to vector<8x256xf32>
    %22 = arith.addf %20, %21 : vector<8x256xf32>
    %cst_5 = arith.constant dense<0.000000e+00> : vector<8xf32>
    %23 = vector.multi_reduction <add>, %19, %cst_5 [1] : vector<8x256xf32> to vector<8xf32>
    %24 = vector.shape_cast %23 : vector<8xf32> to vector<8x1xf32>
    %cst_6 = arith.constant 2.560000e+02 : f32
    %25 = vector.broadcast %cst_6 : f32 to vector<8x1xf32>
    %26 = arith.divf %24, %25 : vector<8x1xf32>
    %27 = arith.mulf %19, %19 : vector<8x256xf32>
    %cst_7 = arith.constant dense<0.000000e+00> : vector<8xf32>
    %28 = vector.multi_reduction <add>, %27, %cst_7 [1] : vector<8x256xf32> to vector<8xf32>
    %29 = vector.shape_cast %28 : vector<8xf32> to vector<8x1xf32>
    %cst_8 = arith.constant 2.560000e+02 : f32
    %30 = vector.broadcast %cst_8 : f32 to vector<8x1xf32>
    %31 = arith.divf %29, %30 : vector<8x1xf32>
    %32 = arith.mulf %26, %26 : vector<8x1xf32>
    %33 = arith.subf %31, %32 : vector<8x1xf32>
    %34 = vector.broadcast %26 : vector<8x1xf32> to vector<8x256xf32>
    %35 = arith.subf %19, %34 : vector<8x256xf32>
    %cst_9 = arith.constant 9.99999974E-6 : f32
    %36 = vector.broadcast %cst_9 : f32 to vector<8x1xf32>
    %37 = arith.addf %33, %36 : vector<8x1xf32>
    %38 = math.rsqrt %37 : vector<8x1xf32>
    %39 = vector.broadcast %38 : vector<8x1xf32> to vector<8x256xf32>
    %40 = arith.mulf %35, %39 : vector<8x256xf32>
    %41 = vector.broadcast %3 : vector<1x256xf32> to vector<8x256xf32>
    %42 = arith.mulf %40, %41 : vector<8x256xf32>
    %43 = vector.broadcast %4 : vector<1x256xf32> to vector<8x256xf32>
    %44 = arith.addf %42, %43 : vector<8x256xf32>
    %cst_10 = arith.constant 0.000000e+00 : f32
    %45 = vector.broadcast %cst_10 : f32 to vector<8x256xf32>
    %46 = arith.maximumf %44, %45 : vector<8x256xf32>
    %47 = arith.truncf %46 : vector<8x256xf32> to vector<8x256xbf16>
    %c0_11 = arith.constant 0 : index
    %c0_12 = arith.constant 0 : index
    %48 = vector.load %arg3[%c0_11, %c0_12] : memref<256x256xbf16, #tpu.memory_space<vmem>>, vector<256x256xbf16>
    %cst_13 = arith.constant dense<0.000000e+00> : vector<8x256xf32>
    %49 = tpu.matmul %47, %48, %cst_13 {dimension_numbers = #tpu.dot_dimension_numbers<[1], [0], [0], [1], [0, 0, 1, 1], [], []>} : vector<8x256xbf16>, vector<256x256xbf16>, vector<8x256xf32> -> vector<8x256xf32>
    %50 = vector.broadcast %5 : vector<1x256xf32> to vector<8x256xf32>
    %51 = arith.addf %49, %50 : vector<8x256xf32>
    %cst_14 = arith.constant dense<0.000000e+00> : vector<8xf32>
    %52 = vector.multi_reduction <add>, %51, %cst_14 [1] : vector<8x256xf32> to vector<8xf32>
    %53 = vector.shape_cast %52 : vector<8xf32> to vector<8x1xf32>
    %cst_15 = arith.constant 2.560000e+02 : f32
    %54 = vector.broadcast %cst_15 : f32 to vector<8x1xf32>
    %55 = arith.divf %53, %54 : vector<8x1xf32>
    %56 = arith.mulf %51, %51 : vector<8x256xf32>
    %cst_16 = arith.constant dense<0.000000e+00> : vector<8xf32>
    %57 = vector.multi_reduction <add>, %56, %cst_16 [1] : vector<8x256xf32> to vector<8xf32>
    %58 = vector.shape_cast %57 : vector<8xf32> to vector<8x1xf32>
    %cst_17 = arith.constant 2.560000e+02 : f32
    %59 = vector.broadcast %cst_17 : f32 to vector<8x1xf32>
    %60 = arith.divf %58, %59 : vector<8x1xf32>
    %61 = arith.mulf %55, %55 : vector<8x1xf32>
    %62 = arith.subf %60, %61 : vector<8x1xf32>
    %63 = vector.broadcast %55 : vector<8x1xf32> to vector<8x256xf32>
    %64 = arith.subf %51, %63 : vector<8x256xf32>
    %cst_18 = arith.constant 9.99999974E-6 : f32
    %65 = vector.broadcast %cst_18 : f32 to vector<8x1xf32>
    %66 = arith.addf %62, %65 : vector<8x1xf32>
    %67 = math.rsqrt %66 : vector<8x1xf32>
    %68 = vector.broadcast %67 : vector<8x1xf32> to vector<8x256xf32>
    %69 = arith.mulf %64, %68 : vector<8x256xf32>
    %70 = vector.broadcast %6 : vector<1x256xf32> to vector<8x256xf32>
    %71 = arith.mulf %69, %70 : vector<8x256xf32>
    %72 = vector.broadcast %7 : vector<1x256xf32> to vector<8x256xf32>
    %73 = arith.addf %71, %72 : vector<8x256xf32>
    %cst_19 = arith.constant 0.000000e+00 : f32
    %74 = vector.broadcast %cst_19 : f32 to vector<8x256xf32>
    %75 = arith.maximumf %73, %74 : vector<8x256xf32>
    %76 = arith.truncf %75 : vector<8x256xf32> to vector<8x256xbf16>
    %c0_20 = arith.constant 0 : index
    %c0_21 = arith.constant 0 : index
    %77 = vector.load %arg4[%c0_20, %c0_21] : memref<256x256xbf16, #tpu.memory_space<vmem>>, vector<256x256xbf16>
    %cst_22 = arith.constant dense<0.000000e+00> : vector<8x256xf32>
    %78 = tpu.matmul %76, %77, %cst_22 {dimension_numbers = #tpu.dot_dimension_numbers<[1], [0], [0], [1], [0, 0, 1, 1], [], []>} : vector<8x256xbf16>, vector<256x256xbf16>, vector<8x256xf32> -> vector<8x256xf32>
    %79 = vector.broadcast %8 : vector<1x256xf32> to vector<8x256xf32>
    %80 = arith.addf %78, %79 : vector<8x256xf32>
    %cst_23 = arith.constant dense<0.000000e+00> : vector<8xf32>
    %81 = vector.multi_reduction <add>, %80, %cst_23 [1] : vector<8x256xf32> to vector<8xf32>
    %82 = vector.shape_cast %81 : vector<8xf32> to vector<8x1xf32>
    %cst_24 = arith.constant 2.560000e+02 : f32
    %83 = vector.broadcast %cst_24 : f32 to vector<8x1xf32>
    %84 = arith.divf %82, %83 : vector<8x1xf32>
    %85 = arith.mulf %80, %80 : vector<8x256xf32>
    %cst_25 = arith.constant dense<0.000000e+00> : vector<8xf32>
    %86 = vector.multi_reduction <add>, %85, %cst_25 [1] : vector<8x256xf32> to vector<8xf32>
    %87 = vector.shape_cast %86 : vector<8xf32> to vector<8x1xf32>
    %cst_26 = arith.constant 2.560000e+02 : f32
    %88 = vector.broadcast %cst_26 : f32 to vector<8x1xf32>
    %89 = arith.divf %87, %88 : vector<8x1xf32>
    %90 = arith.mulf %84, %84 : vector<8x1xf32>
    %91 = arith.subf %89, %90 : vector<8x1xf32>
    %92 = vector.broadcast %84 : vector<8x1xf32> to vector<8x256xf32>
    %93 = arith.subf %80, %92 : vector<8x256xf32>
    %cst_27 = arith.constant 9.99999974E-6 : f32
    %94 = vector.broadcast %cst_27 : f32 to vector<8x1xf32>
    %95 = arith.addf %91, %94 : vector<8x1xf32>
    %96 = math.rsqrt %95 : vector<8x1xf32>
    %97 = vector.broadcast %96 : vector<8x1xf32> to vector<8x256xf32>
    %98 = arith.mulf %93, %97 : vector<8x256xf32>
    %99 = vector.broadcast %9 : vector<1x256xf32> to vector<8x256xf32>
    %100 = arith.mulf %98, %99 : vector<8x256xf32>
    %101 = vector.broadcast %10 : vector<1x256xf32> to vector<8x256xf32>
    %102 = arith.addf %100, %101 : vector<8x256xf32>
    %cst_28 = arith.constant 0.000000e+00 : f32
    %103 = vector.broadcast %cst_28 : f32 to vector<8x256xf32>
    %104 = arith.maximumf %102, %103 : vector<8x256xf32>
    %105 = arith.addf %104, %22 : vector<8x256xf32>
    %106 = vector.broadcast %11 : vector<1x256xf32> to vector<8x256xf32>
    %107 = arith.mulf %105, %106 : vector<8x256xf32>
    %cst_29 = arith.constant dense<0.000000e+00> : vector<8xf32>
    %108 = vector.multi_reduction <add>, %107, %cst_29 [1] : vector<8x256xf32> to vector<8xf32>
    %109 = vector.shape_cast %108 : vector<8xf32> to vector<8x1xf32>
    %110 = vector.broadcast %12 : vector<1x1xf32> to vector<8x1xf32>
    %111 = arith.addf %109, %110 : vector<8x1xf32>
    %c0_30 = arith.constant 0 : index
    %c0_31 = arith.constant 0 : index
    %112 = vector.load %arg6[%c0_30, %c0_31] : memref<8x1xf32, #tpu.memory_space<vmem>>, vector<8x1xf32>
    tpu.vector_store %arg6[%c0_30, %c0_31], %111 {strides = array<i32>} : memref<8x1xf32, #tpu.memory_space<vmem>>, vector<8x1xf32>,
    return
  }
  func.func @transform_0(%arg0: i32) -> (i32, i32) {
    %c0_i32 = arith.constant 0 : i32
    %c0_i32_0 = arith.constant 0 : i32
    return %arg0, %c0_i32 : i32, i32
  }
  func.func @transform_1(%arg0: i32) -> (i32, i32) {
    %c0_i32 = arith.constant 0 : i32
    %c0_i32_0 = arith.constant 0 : i32
    %c0_i32_1 = arith.constant 0 : i32
    return %c0_i32, %c0_i32_0 : i32, i32
  }
  func.func @transform_2(%arg0: i32) -> (i32, i32) {
    %c0_i32 = arith.constant 0 : i32
    %c0_i32_0 = arith.constant 0 : i32
    %c0_i32_1 = arith.constant 0 : i32
    return %c0_i32, %c0_i32_0 : i32, i32
  }
  func.func @transform_3(%arg0: i32) -> (i32, i32) {
    %c0_i32 = arith.constant 0 : i32
    %c0_i32_0 = arith.constant 0 : i32
    %c0_i32_1 = arith.constant 0 : i32
    return %c0_i32, %c0_i32_0 : i32, i32
  }
  func.func @transform_4(%arg0: i32) -> (i32, i32) {
    %c0_i32 = arith.constant 0 : i32
    %c0_i32_0 = arith.constant 0 : i32
    %c0_i32_1 = arith.constant 0 : i32
    return %c0_i32, %c0_i32_0 : i32, i32
  }
  func.func @transform_5(%arg0: i32) -> (i32, i32) {
    %c0_i32 = arith.constant 0 : i32
    %c0_i32_0 = arith.constant 0 : i32
    return %arg0, %c0_i32 : i32, i32
  }
}

</mosaic_0001>

<llo_original>
// kernel: critic_forward.1
$region0: #{critic_forward.1}
  #allocation0 [shape = 'u32[]', space=smem, size = 0x4, offset = 0x4, fixed_abs, tag = 'smem constant byte address 0x4 - core index']
  #allocation1 [shape = 'u32[144,128]{1,0:T(1,128)}', space=vmem, size = 0x12000, scoped, tag = 'internal scratch']
  %s0 = inlined_call_operand.hbm [shape: f32[8,16], index: 0, kind: input, shape index: {}]
  %s1 = inlined_call_operand.hbm [shape: bf16[16,512], index: 1, kind: input, shape index: {}]
  %s2 = inlined_call_operand.hbm [shape: bf16[256,256], index: 2, kind: input, shape index: {}]
  %s3 = inlined_call_operand.hbm [shape: bf16[256,256], index: 3, kind: input, shape index: {}]
  %s4 = inlined_call_operand.hbm [shape: f32[12,256], index: 4, kind: input, shape index: {}]
  %s5 = inlined_call_operand.vmem [shape: f32[8,1], index: 5, kind: output, shape index: {}]
  %s6 = sld [smem:[#allocation0]]
  $region50: #{critic_forward.1} parent=0
    _
  %s8 = ssub.s32 1, %s6
  %s9 = scalar_select 0, %s8, %s6
  $region1: #{critic_forward.1} parent=0
    #allocation2 [shape = 'u8[4096]{0}', space=vmem, size = 0x1000, scoped, tag = 'input window, operand 0, single buffered']
    #allocation3 [shape = 's32[1]{0}', space=sflag, size = 0x4, scoped, tag = 'scoped memory for critic_forward.1']
    #allocation4 [shape = 'u8[16384]{0}', space=vmem, size = 0x4000, scoped, tag = 'input window, operand 1, single buffered']
    #allocation5 [shape = 's32[1]{0}', space=sflag, size = 0x4, scoped, tag = 'scoped memory for critic_forward.1']
    #allocation6 [shape = 'u8[131072]{0}', space=vmem, size = 0x20000, scoped, tag = 'input window, operand 2, single buffered']
    #allocation7 [shape = 'u8[131072]{0}', space=vmem, size = 0x20000, scoped, tag = 'input window, operand 3, single buffered']
    #allocation8 [shape = 's32[1]{0}', space=sflag, size = 0x4, scoped, tag = 'scoped memory for critic_forward.1']
    #allocation9 [shape = 'u8[16384]{0}', space=vmem, size = 0x4000, scoped, tag = 'input window, operand 4, single buffered']
    %10 = vsyncpa [#allocation3], 0
    %11 = vsyncpa [#allocation5], 0
    %12 = vsyncpa [#allocation8], 0
    // Predicated region
    $region2: #{critic_forward.1} parent=1 // pred_check
      _
    $region3: #{critic_forward.1} parent=1 // pred_check_branch
      %14 = sbr.rel (0) target = $region5
    $region4: #{critic_forward.1} parent=1 // pred_region
      %s16 = ssub.s32 128, 128
      %17 = vsyncadd [#allocation3], %s16
      %s19 = sshll.u32 [#allocation2], 4
      %s20 = int_to_ptr.vmem [resolvable:$true] %s19
      %22 = dma.hbm_to_vmem [thread:$0]  %s0, 128, %s20, [#allocation3]
    $region5: #{critic_forward.1} parent=1 // pred_fallthru
      _
    // Predicated region
    $region6: #{critic_forward.1} parent=1 // pred_check
      _
    $region7: #{critic_forward.1} parent=1 // pred_check_branch
      %24 = sbr.rel (0) target = $region9
    $region8: #{critic_forward.1} parent=1 // pred_region
      %s26 = ssub.s32 512, 512
      %27 = vsyncadd [#allocation5], %s26
      %s28 = sshll.u32 [#allocation4], 4
      %s29 = int_to_ptr.vmem [resolvable:$true] %s28
      %34 = dma.hbm_to_vmem [thread:$0]  %s1, 512, %s29, [#allocation5], 256, 256, 16
    $region9: #{critic_forward.1} parent=1 // pred_fallthru
      _
    // Predicated region
    $region10: #{critic_forward.1} parent=1 // pred_check
      _
    $region11: #{critic_forward.1} parent=1 // pred_check_branch
      %36 = sbr.rel (0) target = $region13
    $region12: #{critic_forward.1} parent=1 // pred_region
      %s38 = ssub.s32 4096, 4096
      %39 = vsyncadd [#allocation5], %s38
      %s40 = sshll.u32 [#allocation6], 4
      %s41 = int_to_ptr.vmem [resolvable:$true] %s40
      %46 = dma.hbm_to_vmem [thread:$0]  %s2, 4096, %s41, [#allocation5], 128, 128, 8
    $region13: #{critic_forward.1} parent=1 // pred_fallthru
      _
    // Predicated region
    $region14: #{critic_forward.1} parent=1 // pred_check
      _
    $region15: #{critic_forward.1} parent=1 // pred_check_branch
      %48 = sbr.rel (0) target = $region17
    $region16: #{critic_forward.1} parent=1 // pred_region
      %s50 = ssub.s32 4096, 4096
      %51 = vsyncadd [#allocation8], %s50
      %s52 = sshll.u32 [#allocation7], 4
      %s53 = int_to_ptr.vmem [resolvable:$true] %s52
      %58 = dma.hbm_to_vmem [thread:$0]  %s3, 4096, %s53, [#allocation8], 128, 128, 8
    $region17: #{critic_forward.1} parent=1 // pred_fallthru
      _
    // Predicated region
    $region18: #{critic_forward.1} parent=1 // pred_check
      _
    $region19: #{critic_forward.1} parent=1 // pred_check_branch
      %60 = sbr.rel (0) target = $region21
    $region20: #{critic_forward.1} parent=1 // pred_region
      %s62 = ssub.s32 512, 512
      %63 = vsyncadd [#allocation8], %s62
      %s64 = sshll.u32 [#allocation9], 4
      %s65 = int_to_ptr.vmem [resolvable:$true] %s64
      %70 = dma.hbm_to_vmem [thread:$0]  %s4, 512, %s65, [#allocation8], 256, 256, 16
    $region21: #{critic_forward.1} parent=1 // pred_fallthru
      _
    // Predicated region
    $region22: #{critic_forward.1} parent=1 // pred_check
      _
    $region23: #{critic_forward.1} parent=1 // pred_check_branch
      %72 = sbr.rel (0) target = $region25
    $region24: #{critic_forward.1} parent=1 // pred_region
      %73 = dma.done [#allocation3], 128
    $region25: #{critic_forward.1} parent=1 // pred_fallthru
      _
    // Predicated region
    $region26: #{critic_forward.1} parent=1 // pred_check
      _
    $region27: #{critic_forward.1} parent=1 // pred_check_branch
      %75 = sbr.rel (0) target = $region29
    $region28: #{critic_forward.1} parent=1 // pred_region
      %76 = dma.done [#allocation5], 512
    $region29: #{critic_forward.1} parent=1 // pred_fallthru
      _
    // Predicated region
    $region30: #{critic_forward.1} parent=1 // pred_check
      _
    $region31: #{critic_forward.1} parent=1 // pred_check_branch
      %78 = sbr.rel (0) target = $region33
    $region32: #{critic_forward.1} parent=1 // pred_region
      %79 = dma.done [#allocation5], 4096
    $region33: #{critic_forward.1} parent=1 // pred_fallthru
      _
    // Predicated region
    $region34: #{critic_forward.1} parent=1 // pred_check
      _
    $region35: #{critic_forward.1} parent=1 // pred_check_branch
      %81 = sbr.rel (0) target = $region37
    $region36: #{critic_forward.1} parent=1 // pred_region
      %82 = dma.done [#allocation8], 4096
    $region37: #{critic_forward.1} parent=1 // pred_fallthru
      _
    // Predicated region
    $region38: #{critic_forward.1} parent=1 // pred_check
      _
    $region39: #{critic_forward.1} parent=1 // pred_check_branch
      %84 = sbr.rel (0) target = $region41
    $region40: #{critic_forward.1} parent=1 // pred_region
      %85 = dma.done [#allocation8], 512
    $region41: #{critic_forward.1} parent=1 // pred_fallthru
      _
    %v87 = vld [vmem:[#allocation9] sm:$0xff]
    %v88 = vld [vmem:[#allocation9 + $0x8] sm:$0xff]
    %v89 = vld [vmem:[#allocation9 + $0x10] sm:$0xf]
    %v90 = vld [vmem:[#allocation9 + $0x18] sm:$0xf]
    %v91 = vld [vmem:[#allocation2] sm:$0xff]
    %v92 = vpack.c.bf16 %v91, %v91
    %v93 = vld [vmem:[#allocation4] sm:$0xff]
    %v94 = vld [vmem:[#allocation4 + $0x8] sm:$0xff]
    %v95 = vld [vmem:[#allocation4 + $0x10] sm:$0xff]
    %v96 = vld [vmem:[#allocation4 + $0x18] sm:$0xff]
    %v101 = vunpack.c.l.b16 %v93
    %v102 = vunpack.c.h.b16 %v93
    %v103 = vunpack.c.l.b16 %v94
    %v104 = vunpack.c.h.b16 %v94
    %v105 = vunpack.c.l.b16 %v95
    %v106 = vunpack.c.h.b16 %v95
    %v107 = vunpack.c.l.b16 %v96
    %v108 = vunpack.c.h.b16 %v96
    %v109 = vpack.c.b16 %v105, %v101
    %v110 = vpack.c.b16 %v106, %v102
    %v111 = vpack.c.b16 %v107, %v103
    %v112 = vpack.c.b16 %v108, %v104
    %vm117 = vcmask 130048
    %v119 = vsel %vm117, %v92, 0
    %121 = vmatprep.subr.bf16.mxu0 0
    %122 = vmatpush1.bf16.msra.mxu0 0
    %123 = vmatprep.subr.bf16.mxu0 0
    %124 = vmatpush1.bf16.msra.mxu0 0
    %125 = vmatprep.subr.bf16.mxu0 0
    %126 = vmatpush1.bf16.msra.mxu0 0
    %127 = vmatprep.subr.bf16.mxu0 0
    %128 = vmatpush1.bf16.msra.mxu0 0
    %129 = vmatprep.subr.bf16.mxu0 0
    %130 = vmatpush1.bf16.msra.mxu0 0
    %131 = vmatprep.subr.bf16.mxu0 0
    %132 = vmatpush1.bf16.msra.mxu0 0
    %133 = vmatprep.subr.bf16.mxu0 0
    %134 = vmatpush1.bf16.msra.mxu0 0
    %135 = vmatprep.subr.bf16.mxu0 %v110
    %136 = vmatpush1.bf16.msra.mxu0 %v109
    %137 = vmatprep.subr.bf16.mxu0 0
    %138 = vmatpush2.bf16.msra.mxu0 0
    %139 = vmatprep.subr.bf16.mxu0 0
    %140 = vmatpush2.bf16.msra.mxu0 0
    %141 = vmatprep.subr.bf16.mxu0 0
    %142 = vmatpush2.bf16.msra.mxu0 0
    %143 = vmatprep.subr.bf16.mxu0 0
    %144 = vmatpush2.bf16.msra.mxu0 0
    %145 = vmatprep.subr.bf16.mxu0 0
    %146 = vmatpush2.bf16.msra.mxu0 0
    %147 = vmatprep.subr.bf16.mxu0 0
    %148 = vmatpush2.bf16.msra.mxu0 0
    %149 = vmatprep.subr.bf16.mxu0 0
    %150 = vmatpush2.bf16.msra.mxu0 0
    %151 = vmatprep.subr.bf16.mxu0 0
    %152 = vmatpush2.bf16.msra.mxu0 0
    %153 = vmatprep.mubr.bf16.mxu0 0
    %154 = vmatmul.mubr.bf16.gmra.mxu0 %v119
    %v155 = vpop.f32.mrf.mxu0
    %v156 = vadd.f32 0.0, %v155
    %v157 = vpop.f32.mrf.mxu0
    %v158 = vadd.f32 0.0, %v157
    %v159 = vpop.f32.mrf.mxu0
    %v160 = vpop.f32.mrf.mxu0
    %161 = vdwg.mxu0
    %162 = vmatprep.subr.bf16.mxu0 0
    %163 = vmatpush1.bf16.msra.mxu0 0
    %164 = vmatprep.subr.bf16.mxu0 0
    %165 = vmatpush1.bf16.msra.mxu0 0
    %166 = vmatprep.subr.bf16.mxu0 0
    %167 = vmatpush1.bf16.msra.mxu0 0
    %168 = vmatprep.subr.bf16.mxu0 0
    %169 = vmatpush1.bf16.msra.mxu0 0
    %170 = vmatprep.subr.bf16.mxu0 0
    %171 = vmatpush1.bf16.msra.mxu0 0
    %172 = vmatprep.subr.bf16.mxu0 0
    %173 = vmatpush1.bf16.msra.mxu0 0
    %174 = vmatprep.subr.bf16.mxu0 0
    %175 = vmatpush1.bf16.msra.mxu0 0
    %176 = vmatprep.subr.bf16.mxu0 %v112
    %177 = vmatpush1.bf16.msra.mxu0 %v111
    %178 = vmatprep.subr.bf16.mxu0 0
    %179 = vmatpush2.bf16.msra.mxu0 0
    %180 = vmatprep.subr.bf16.mxu0 0
    %181 = vmatpush2.bf16.msra.mxu0 0
    %182 = vmatprep.subr.bf16.mxu0 0
    %183 = vmatpush2.bf16.msra.mxu0 0
    %184 = vmatprep.subr.bf16.mxu0 0
    %185 = vmatpush2.bf16.msra.mxu0 0
    %186 = vmatprep.subr.bf16.mxu0 0
    %187 = vmatpush2.bf16.msra.mxu0 0
    %188 = vmatprep.subr.bf16.mxu0 0
    %189 = vmatpush2.bf16.msra.mxu0 0
    %190 = vmatprep.subr.bf16.mxu0 0
    %191 = vmatpush2.bf16.msra.mxu0 0
    %192 = vmatprep.subr.bf16.mxu0 0
    %193 = vmatpush2.bf16.msra.mxu0 0
    %194 = vmatprep.mubr.bf16.mxu0 0
    %195 = vmatmul.mubr.bf16.gmra.mxu0 %v119
    %v196 = vpop.f32.mrf.mxu0
    %v197 = vadd.f32 0.0, %v196
    %v198 = vpop.f32.mrf.mxu0
    %v199 = vadd.f32 0.0, %v198
    %v200 = vpop.f32.mrf.mxu0
    %v201 = vpop.f32.mrf.mxu0
    %202 = vdwg.mxu0
    %v203 = vlaneseq
    %v204 = vshrl.u32 %v203, 7
    %v205 = vsub.s32 0, %v204
    %v206 = vrot.slane %v87, %v205
    %v207 = vlaneseq
    %v208 = vshrl.u32 %v207, 7
    %v209 = vsub.s32 0, %v208
    %v210 = vrot.slane %v88, %v209
    %v211 = vadd.f32 %v156, %v206
    %v212 = vadd.f32 %v158, %v210
    %v213 = vlaneseq
    %v214 = vshrl.u32 %v213, 7
    %v215 = vsub.s32 1, %v214
    %v216 = vrot.slane %v87, %v215
    %v217 = vlaneseq
    %v218 = vshrl.u32 %v217, 7
    %v219 = vsub.s32 1, %v218
    %v220 = vrot.slane %v88, %v219
    %v221 = vadd.f32 %v197, %v216
    %v222 = vadd.f32 %v199, %v220
    %v223 = vadd.f32 %v211, %v212
    %224 = vadd.xlane.f32.xlu0 %v223
    %v225 = vpop.xlane.xlu0 %224
    %v226 = vrcp.pop 256.0
    %v227 = vmul.f32 %v225, %v226
    %v228 = vmul.f32 %v211, %v211
    %v229 = vmul.f32 %v212, %v212
    %v230 = vadd.f32 %v228, %v229
    %231 = vadd.xlane.f32.xlu0 %v230
    %v232 = vpop.xlane.xlu0 %231
    %v233 = vmul.f32 %v232, %v226
    %v234 = vmul.f32 %v227, %v227
    %v235 = vsub.f32 %v233, %v234
    %v236 = vsub.f32 %v211, %v227
    %v237 = vsub.f32 %v212, %v227
    %v238 = vadd.f32 %v235, 1e-05
    %v239 = vrsqrt.pop %v238
    %v240 = vmul.f32 %v236, %v239
    %v241 = vmul.f32 %v237, %v239
    %v242 = vlaneseq
    %v243 = vshrl.u32 %v242, 7
    %v244 = vsub.s32 2, %v243
    %v245 = vrot.slane %v87, %v244
    %v246 = vlaneseq
    %v247 = vshrl.u32 %v246, 7
    %v248 = vsub.s32 2, %v247
    %v249 = vrot.slane %v88, %v248
    %v250 = vmul.f32 %v240, %v245
    %v251 = vmul.f32 %v241, %v249
    %v252 = vlaneseq
    %v253 = vshrl.u32 %v252, 7
    %v254 = vsub.s32 3, %v253
    %v255 = vrot.slane %v87, %v254
    %v256 = vlaneseq
    %v257 = vshrl.u32 %v256, 7
    %v258 = vsub.s32 3, %v257
    %v259 = vrot.slane %v88, %v258
    %v260 = vadd.f32 %v250, %v255
    %v261 = vadd.f32 %v251, %v259
    %v262 = vmax.f32 %v260, 0.0
    %v263 = vmax.f32 %v261, 0.0
    %v264 = vpack.c.bf16 %v262, %v262
    %v265 = vpack.c.bf16 %v263, %v263
    %v266 = vld [vmem:[#allocation6] sm:$0xff]
    %v267 = vld [vmem:[#allocation6 + $0x8] sm:$0xff]
    %v268 = vld [vmem:[#allocation6 + $0x10] sm:$0xff]
    %v269 = vld [vmem:[#allocation6 + $0x18] sm:$0xff]
    %v270 = vld [vmem:[#allocation6 + $0x20] sm:$0xff]
    %v271 = vld [vmem:[#allocation6 + $0x28] sm:$0xff]
    %v272 = vld [vmem:[#allocation6 + $0x30] sm:$0xff]
    %v273 = vld [vmem:[#allocation6 + $0x38] sm:$0xff]
    %v274 = vld [vmem:[#allocation6 + $0x40] sm:$0xff]
    %v275 = vld [vmem:[#allocation6 + $0x48] sm:$0xff]
    %v276 = vld [vmem:[#allocation6 + $0x50] sm:$0xff]
    %v277 = vld [vmem:[#allocation6 + $0x58] sm:$0xff]
    %v278 = vld [vmem:[#allocation6 + $0x60] sm:$0xff]
    %v279 = vld [vmem:[#allocation6 + $0x68] sm:$0xff]
    %v280 = vld [vmem:[#allocation6 + $0x70] sm:$0xff]
    %v281 = vld [vmem:[#allocation6 + $0x78] sm:$0xff]
    %v282 = vld [vmem:[#allocation6 + $0x80] sm:$0xff]
    %v283 = vld [vmem:[#allocation6 + $0x88] sm:$0xff]
    %v284 = vld [vmem:[#allocation6 + $0x90] sm:$0xff]
    %v285 = vld [vmem:[#allocation6 + $0x98] sm:$0xff]
    %v286 = vld [vmem:[#allocation6 + $0xa0] sm:$0xff]
    %v287 = vld [vmem:[#allocation6 + $0xa8] sm:$0xff]
    %v288 = vld [vmem:[#allocation6 + $0xb0] sm:$0xff]
    %v289 = vld [vmem:[#allocation6 + $0xb8] sm:$0xff]
    %v290 = vld [vmem:[#allocation6 + $0xc0] sm:$0xff]
    %v291 = vld [vmem:[#allocation6 + $0xc8] sm:$0xff]
    %v292 = vld [vmem:[#allocation6 + $0xd0] sm:$0xff]
    %v293 = vld [vmem:[#allocation6 + $0xd8] sm:$0xff]
    %v294 = vld [vmem:[#allocation6 + $0xe0] sm:$0xff]
    %v295 = vld [vmem:[#allocation6 + $0xe8] sm:$0xff]
    %v296 = vld [vmem:[#allocation6 + $0xf0] sm:$0xff]
    %v297 = vld [vmem:[#allocation6 + $0xf8] sm:$0xff]
    %v298 = vlaneseq
    %v299 = vshrl.u32 %v298, 7
    %v300 = vsub.s32 4, %v299
    %v301 = vrot.slane %v87, %v300
    %v302 = vlaneseq
    %v303 = vshrl.u32 %v302, 7
    %v304 = vsub.s32 4, %v303
    %v305 = vrot.slane %v88, %v304
    %v338 = vunpack.c.l.b16 %v266
    %v339 = vunpack.c.h.b16 %v266
    %v340 = vunpack.c.l.b16 %v267
    %v341 = vunpack.c.h.b16 %v267
    %v342 = vunpack.c.l.b16 %v268
    %v343 = vunpack.c.h.b16 %v268
    %v344 = vunpack.c.l.b16 %v269
    %v345 = vunpack.c.h.b16 %v269
    %v346 = vunpack.c.l.b16 %v270
    %v347 = vunpack.c.h.b16 %v270
    %v348 = vunpack.c.l.b16 %v271
    %v349 = vunpack.c.h.b16 %v271
    %v350 = vunpack.c.l.b16 %v272
    %v351 = vunpack.c.h.b16 %v272
    %v352 = vunpack.c.l.b16 %v273
    %v353 = vunpack.c.h.b16 %v273
    %v354 = vunpack.c.l.b16 %v274
    %v355 = vunpack.c.h.b16 %v274
    %v356 = vunpack.c.l.b16 %v275
    %v357 = vunpack.c.h.b16 %v275
    %v358 = vunpack.c.l.b16 %v276
    %v359 = vunpack.c.h.b16 %v276
    %v360 = vunpack.c.l.b16 %v277
    %v361 = vunpack.c.h.b16 %v277
    %v362 = vunpack.c.l.b16 %v278
    %v363 = vunpack.c.h.b16 %v278
    %v364 = vunpack.c.l.b16 %v279
    %v365 = vunpack.c.h.b16 %v279
    %v366 = vunpack.c.l.b16 %v280
    %v367 = vunpack.c.h.b16 %v280
    %v368 = vunpack.c.l.b16 %v281
    %v369 = vunpack.c.h.b16 %v281
    %v370 = vunpack.c.l.b16 %v282
    %v371 = vunpack.c.h.b16 %v282
    %v372 = vunpack.c.l.b16 %v283
    %v373 = vunpack.c.h.b16 %v283
    %v374 = vunpack.c.l.b16 %v284
    %v375 = vunpack.c.h.b16 %v284
    %v376 = vunpack.c.l.b16 %v285
    %v377 = vunpack.c.h.b16 %v285
    %v378 = vunpack.c.l.b16 %v286
    %v379 = vunpack.c.h.b16 %v286
    %v380 = vunpack.c.l.b16 %v287
    %v381 = vunpack.c.h.b16 %v287
    %v382 = vunpack.c.l.b16 %v288
    %v383 = vunpack.c.h.b16 %v288
    %v384 = vunpack.c.l.b16 %v289
    %v385 = vunpack.c.h.b16 %v289
    %v386 = vunpack.c.l.b16 %v290
    %v387 = vunpack.c.h.b16 %v290
    %v388 = vunpack.c.l.b16 %v291
    %v389 = vunpack.c.h.b16 %v291
    %v390 = vunpack.c.l.b16 %v292
    %v391 = vunpack.c.h.b16 %v292
    %v392 = vunpack.c.l.b16 %v293
    %v393 = vunpack.c.h.b16 %v293
    %v394 = vunpack.c.l.b16 %v294
    %v395 = vunpack.c.h.b16 %v294
    %v396 = vunpack.c.l.b16 %v295
    %v397 = vunpack.c.h.b16 %v295
    %v398 = vunpack.c.l.b16 %v296
    %v399 = vunpack.c.h.b16 %v296
    %v400 = vunpack.c.l.b16 %v297
    %v401 = vunpack.c.h.b16 %v297
    %v402 = vpack.c.b16 %v340, %v338
    %v403 = vpack.c.b16 %v341, %v339
    %v404 = vpack.c.b16 %v344, %v342
    %v405 = vpack.c.b16 %v345, %v343
    %v406 = vpack.c.b16 %v348, %v346
    %v407 = vpack.c.b16 %v349, %v347
    %v408 = vpack.c.b16 %v352, %v350
    %v409 = vpack.c.b16 %v353, %v351
    %v410 = vpack.c.b16 %v356, %v354
    %v411 = vpack.c.b16 %v357, %v355
    %v412 = vpack.c.b16 %v360, %v358
    %v413 = vpack.c.b16 %v361, %v359
    %v414 = vpack.c.b16 %v364, %v362
    %v415 = vpack.c.b16 %v365, %v363
    %v416 = vpack.c.b16 %v368, %v366
    %v417 = vpack.c.b16 %v369, %v367
    %v418 = vpack.c.b16 %v372, %v370
    %v419 = vpack.c.b16 %v373, %v371
    %v420 = vpack.c.b16 %v376, %v374
    %v421 = vpack.c.b16 %v377, %v375
    %v422 = vpack.c.b16 %v380, %v378
    %v423 = vpack.c.b16 %v381, %v379
    %v424 = vpack.c.b16 %v384, %v382
    %v425 = vpack.c.b16 %v385, %v383
    %v426 = vpack.c.b16 %v388, %v386
    %v427 = vpack.c.b16 %v389, %v387
    %v428 = vpack.c.b16 %v392, %v390
    %v429 = vpack.c.b16 %v393, %v391
    %v430 = vpack.c.b16 %v396, %v394
    %v431 = vpack.c.b16 %v397, %v395
    %v432 = vpack.c.b16 %v400, %v398
    %v433 = vpack.c.b16 %v401, %v399
    %466 = vmatprep.subr.bf16.mxu0 %v417
    %467 = vmatpush1.bf16.msra.mxu0 %v416
    %468 = vmatprep.subr.bf16.mxu0 %v415
    %469 = vmatpush1.bf16.msra.mxu0 %v414
    %470 = vmatprep.subr.bf16.mxu0 %v413
    %471 = vmatpush1.bf16.msra.mxu0 %v412
    %472 = vmatprep.subr.bf16.mxu0 %v411
    %473 = vmatpush1.bf16.msra.mxu0 %v410
    %474 = vmatprep.subr.bf16.mxu0 %v409
    %475 = vmatpush1.bf16.msra.mxu0 %v408
    %476 = vmatprep.subr.bf16.mxu0 %v407
    %477 = vmatpush1.bf16.msra.mxu0 %v406
    %478 = vmatprep.subr.bf16.mxu0 %v405
    %479 = vmatpush1.bf16.msra.mxu0 %v404
    %480 = vmatprep.subr.bf16.mxu0 %v403
    %481 = vmatpush1.bf16.msra.mxu0 %v402
    %482 = vmatprep.subr.bf16.mxu0 %v433
    %483 = vmatpush2.bf16.msra.mxu0 %v432
    %484 = vmatprep.subr.bf16.mxu0 %v431
    %485 = vmatpush2.bf16.msra.mxu0 %v430
    %486 = vmatprep.subr.bf16.mxu0 %v429
    %487 = vmatpush2.bf16.msra.mxu0 %v428
    %488 = vmatprep.subr.bf16.mxu0 %v427
    %489 = vmatpush2.bf16.msra.mxu0 %v426
    %490 = vmatprep.subr.bf16.mxu0 %v425
    %491 = vmatpush2.bf16.msra.mxu0 %v424
    %492 = vmatprep.subr.bf16.mxu0 %v423
    %493 = vmatpush2.bf16.msra.mxu0 %v422
    %494 = vmatprep.subr.bf16.mxu0 %v421
    %495 = vmatpush2.bf16.msra.mxu0 %v420
    %496 = vmatprep.subr.bf16.mxu0 %v419
    %497 = vmatpush2.bf16.msra.mxu0 %v418
    %498 = vmatprep.mubr.bf16.mxu0 %v265
    %499 = vmatmul.mubr.bf16.gmra.mxu0 %v264
    %v500 = vpop.f32.mrf.mxu0
    %v501 = vadd.f32 %v301, %v500
    %v502 = vpop.f32.mrf.mxu0
    %v503 = vadd.f32 %v305, %v502
    %v504 = vpop.f32.mrf.mxu0
    %v505 = vpop.f32.mrf.mxu0
    %506 = vdwg.mxu0
    %v507 = vadd.f32 %v501, %v503
    %508 = vadd.xlane.f32.xlu0 %v507
    %v509 = vpop.xlane.xlu0 %508
    %v510 = vmul.f32 %v509, %v226
    %v511 = vmul.f32 %v501, %v501
    %v512 = vmul.f32 %v503, %v503
    %v513 = vadd.f32 %v511, %v512
    %514 = vadd.xlane.f32.xlu0 %v513
    %v515 = vpop.xlane.xlu0 %514
    %v516 = vmul.f32 %v515, %v226
    %v517 = vmul.f32 %v510, %v510
    %v518 = vsub.f32 %v516, %v517
    %v519 = vsub.f32 %v501, %v510
    %v520 = vsub.f32 %v503, %v510
    %v521 = vadd.f32 %v518, 1e-05
    %v522 = vrsqrt.pop %v521
    %v523 = vmul.f32 %v519, %v522
    %v524 = vmul.f32 %v520, %v522
    %v525 = vlaneseq
    %v526 = vshrl.u32 %v525, 7
    %v527 = vsub.s32 5, %v526
    %v528 = vrot.slane %v87, %v527
    %v529 = vlaneseq
    %v530 = vshrl.u32 %v529, 7
    %v531 = vsub.s32 5, %v530
    %v532 = vrot.slane %v88, %v531
    %v533 = vmul.f32 %v523, %v528
    %v534 = vmul.f32 %v524, %v532
    %v535 = vlaneseq
    %v536 = vshrl.u32 %v535, 7
    %v537 = vsub.s32 6, %v536
    %v538 = vrot.slane %v87, %v537
    %v539 = vlaneseq
    %v540 = vshrl.u32 %v539, 7
    %v541 = vsub.s32 6, %v540
    %v542 = vrot.slane %v88, %v541
    %v543 = vadd.f32 %v533, %v538
    %v544 = vadd.f32 %v534, %v542
    %v545 = vmax.f32 %v543, 0.0
    %v546 = vmax.f32 %v544, 0.0
    %v547 = vpack.c.bf16 %v545, %v545
    %v548 = vpack.c.bf16 %v546, %v546
    %v549 = vld [vmem:[#allocation7] sm:$0xff]
    %v550 = vld [vmem:[#allocation7 + $0x8] sm:$0xff]
    %v551 = vld [vmem:[#allocation7 + $0x10] sm:$0xff]
    %v552 = vld [vmem:[#allocation7 + $0x18] sm:$0xff]
    %v553 = vld [vmem:[#allocation7 + $0x20] sm:$0xff]
    %v554 = vld [vmem:[#allocation7 + $0x28] sm:$0xff]
    %v555 = vld [vmem:[#allocation7 + $0x30] sm:$0xff]
    %v556 = vld [vmem:[#allocation7 + $0x38] sm:$0xff]
    %v557 = vld [vmem:[#allocation7 + $0x40] sm:$0xff]
    %v558 = vld [vmem:[#allocation7 + $0x48] sm:$0xff]
    %v559 = vld [vmem:[#allocation7 + $0x50] sm:$0xff]
    %v560 = vld [vmem:[#allocation7 + $0x58] sm:$0xff]
    %v561 = vld [vmem:[#allocation7 + $0x60] sm:$0xff]
    %v562 = vld [vmem:[#allocation7 + $0x68] sm:$0xff]
    %v563 = vld [vmem:[#allocation7 + $0x70] sm:$0xff]
    %v564 = vld [vmem:[#allocation7 + $0x78] sm:$0xff]
    %v565 = vld [vmem:[#allocation7 + $0x80] sm:$0xff]
    %v566 = vld [vmem:[#allocation7 + $0x88] sm:$0xff]
    %v567 = vld [vmem:[#allocation7 + $0x90] sm:$0xff]
    %v568 = vld [vmem:[#allocation7 + $0x98] sm:$0xff]
    %v569 = vld [vmem:[#allocation7 + $0xa0] sm:$0xff]
    %v570 = vld [vmem:[#allocation7 + $0xa8] sm:$0xff]
    %v571 = vld [vmem:[#allocation7 + $0xb0] sm:$0xff]
    %v572 = vld [vmem:[#allocation7 + $0xb8] sm:$0xff]
    %v573 = vld [vmem:[#allocation7 + $0xc0] sm:$0xff]
    %v574 = vld [vmem:[#allocation7 + $0xc8] sm:$0xff]
    %v575 = vld [vmem:[#allocation7 + $0xd0] sm:$0xff]
    %v576 = vld [vmem:[#allocation7 + $0xd8] sm:$0xff]
    %v577 = vld [vmem:[#allocation7 + $0xe0] sm:$0xff]
    %v578 = vld [vmem:[#allocation7 + $0xe8] sm:$0xff]
    %v579 = vld [vmem:[#allocation7 + $0xf0] sm:$0xff]
    %v580 = vld [vmem:[#allocation7 + $0xf8] sm:$0xff]
    %v581 = vlaneseq
    %v582 = vshrl.u32 %v581, 7
    %v583 = vsub.s32 7, %v582
    %v584 = vrot.slane %v87, %v583
    %v585 = vlaneseq
    %v586 = vshrl.u32 %v585, 7
    %v587 = vsub.s32 7, %v586
    %v588 = vrot.slane %v88, %v587
    %v621 = vunpack.c.l.b16 %v549
    %v622 = vunpack.c.h.b16 %v549
    %v623 = vunpack.c.l.b16 %v550
    %v624 = vunpack.c.h.b16 %v550
    %v625 = vunpack.c.l.b16 %v551
    %v626 = vunpack.c.h.b16 %v551
    %v627 = vunpack.c.l.b16 %v552
    %v628 = vunpack.c.h.b16 %v552
    %v629 = vunpack.c.l.b16 %v553
    %v630 = vunpack.c.h.b16 %v553
    %v631 = vunpack.c.l.b16 %v554
    %v632 = vunpack.c.h.b16 %v554
    %v633 = vunpack.c.l.b16 %v555
    %v634 = vunpack.c.h.b16 %v555
    %v635 = vunpack.c.l.b16 %v556
    %v636 = vunpack.c.h.b16 %v556
    %v637 = vunpack.c.l.b16 %v557
    %v638 = vunpack.c.h.b16 %v557
    %v639 = vunpack.c.l.b16 %v558
    %v640 = vunpack.c.h.b16 %v558
    %v641 = vunpack.c.l.b16 %v559
    %v642 = vunpack.c.h.b16 %v559
    %v643 = vunpack.c.l.b16 %v560
    %v644 = vunpack.c.h.b16 %v560
    %v645 = vunpack.c.l.b16 %v561
    %v646 = vunpack.c.h.b16 %v561
    %v647 = vunpack.c.l.b16 %v562
    %v648 = vunpack.c.h.b16 %v562
    %v649 = vunpack.c.l.b16 %v563
    %v650 = vunpack.c.h.b16 %v563
    %v651 = vunpack.c.l.b16 %v564
    %v652 = vunpack.c.h.b16 %v564
    %v653 = vunpack.c.l.b16 %v565
    %v654 = vunpack.c.h.b16 %v565
    %v655 = vunpack.c.l.b16 %v566
    %v656 = vunpack.c.h.b16 %v566
    %v657 = vunpack.c.l.b16 %v567
    %v658 = vunpack.c.h.b16 %v567
    %v659 = vunpack.c.l.b16 %v568
    %v660 = vunpack.c.h.b16 %v568
    %v661 = vunpack.c.l.b16 %v569
    %v662 = vunpack.c.h.b16 %v569
    %v663 = vunpack.c.l.b16 %v570
    %v664 = vunpack.c.h.b16 %v570
    %v665 = vunpack.c.l.b16 %v571
    %v666 = vunpack.c.h.b16 %v571
    %v667 = vunpack.c.l.b16 %v572
    %v668 = vunpack.c.h.b16 %v572
    %v669 = vunpack.c.l.b16 %v573
    %v670 = vunpack.c.h.b16 %v573
    %v671 = vunpack.c.l.b16 %v574
    %v672 = vunpack.c.h.b16 %v574
    %v673 = vunpack.c.l.b16 %v575
    %v674 = vunpack.c.h.b16 %v575
    %v675 = vunpack.c.l.b16 %v576
    %v676 = vunpack.c.h.b16 %v576
    %v677 = vunpack.c.l.b16 %v577
    %v678 = vunpack.c.h.b16 %v577
    %v679 = vunpack.c.l.b16 %v578
    %v680 = vunpack.c.h.b16 %v578
    %v681 = vunpack.c.l.b16 %v579
    %v682 = vunpack.c.h.b16 %v579
    %v683 = vunpack.c.l.b16 %v580
    %v684 = vunpack.c.h.b16 %v580
    %v685 = vpack.c.b16 %v623, %v621
    %v686 = vpack.c.b16 %v624, %v622
    %v687 = vpack.c.b16 %v627, %v625
    %v688 = vpack.c.b16 %v628, %v626
    %v689 = vpack.c.b16 %v631, %v629
    %v690 = vpack.c.b16 %v632, %v630
    %v691 = vpack.c.b16 %v635, %v633
    %v692 = vpack.c.b16 %v636, %v634
    %v693 = vpack.c.b16 %v639, %v637
    %v694 = vpack.c.b16 %v640, %v638
    %v695 = vpack.c.b16 %v643, %v641
    %v696 = vpack.c.b16 %v644, %v642
    %v697 = vpack.c.b16 %v647, %v645
    %v698 = vpack.c.b16 %v648, %v646
    %v699 = vpack.c.b16 %v651, %v649
    %v700 = vpack.c.b16 %v652, %v650
    %v701 = vpack.c.b16 %v655, %v653
    %v702 = vpack.c.b16 %v656, %v654
    %v703 = vpack.c.b16 %v659, %v657
    %v704 = vpack.c.b16 %v660, %v658
    %v705 = vpack.c.b16 %v663, %v661
    %v706 = vpack.c.b16 %v664, %v662
    %v707 = vpack.c.b16 %v667, %v665
    %v708 = vpack.c.b16 %v668, %v666
    %v709 = vpack.c.b16 %v671, %v669
    %v710 = vpack.c.b16 %v672, %v670
    %v711 = vpack.c.b16 %v675, %v673
    %v712 = vpack.c.b16 %v676, %v674
    %v713 = vpack.c.b16 %v679, %v677
    %v714 = vpack.c.b16 %v680, %v678
    %v715 = vpack.c.b16 %v683, %v681
    %v716 = vpack.c.b16 %v684, %v682
    %749 = vmatprep.subr.bf16.mxu0 %v700
    %750 = vmatpush1.bf16.msra.mxu0 %v699
    %751 = vmatprep.subr.bf16.mxu0 %v698
    %752 = vmatpush1.bf16.msra.mxu0 %v697
    %753 = vmatprep.subr.bf16.mxu0 %v696
    %754 = vmatpush1.bf16.msra.mxu0 %v695
    %755 = vmatprep.subr.bf16.mxu0 %v694
    %756 = vmatpush1.bf16.msra.mxu0 %v693
    %757 = vmatprep.subr.bf16.mxu0 %v692
    %758 = vmatpush1.bf16.msra.mxu0 %v691
    %759 = vmatprep.subr.bf16.mxu0 %v690
    %760 = vmatpush1.bf16.msra.mxu0 %v689
    %761 = vmatprep.subr.bf16.mxu0 %v688
    %762 = vmatpush1.bf16.msra.mxu0 %v687
    %763 = vmatprep.subr.bf16.mxu0 %v686
    %764 = vmatpush1.bf16.msra.mxu0 %v685
    %765 = vmatprep.subr.bf16.mxu0 %v716
    %766 = vmatpush2.bf16.msra.mxu0 %v715
    %767 = vmatprep.subr.bf16.mxu0 %v714
    %768 = vmatpush2.bf16.msra.mxu0 %v713
    %769 = vmatprep.subr.bf16.mxu0 %v712
    %770 = vmatpush2.bf16.msra.mxu0 %v711
    %771 = vmatprep.subr.bf16.mxu0 %v710
    %772 = vmatpush2.bf16.msra.mxu0 %v709
    %773 = vmatprep.subr.bf16.mxu0 %v708
    %774 = vmatpush2.bf16.msra.mxu0 %v707
    %775 = vmatprep.subr.bf16.mxu0 %v706
    %776 = vmatpush2.bf16.msra.mxu0 %v705
    %777 = vmatprep.subr.bf16.mxu0 %v704
    %778 = vmatpush2.bf16.msra.mxu0 %v703
    %779 = vmatprep.subr.bf16.mxu0 %v702
    %780 = vmatpush2.bf16.msra.mxu0 %v701
    %781 = vmatprep.mubr.bf16.mxu0 %v548
    %782 = vmatmul.mubr.bf16.gmra.mxu0 %v547
    %v783 = vpop.f32.mrf.mxu0
    %v784 = vadd.f32 %v584, %v783
    %v785 = vpop.f32.mrf.mxu0
    %v786 = vadd.f32 %v588, %v785
    %v787 = vpop.f32.mrf.mxu0
    %v788 = vpop.f32.mrf.mxu0
    %789 = vdwg.mxu0
    %v790 = vadd.f32 %v784, %v786
    %791 = vadd.xlane.f32.xlu0 %v790
    %v792 = vpop.xlane.xlu0 %791
    %v793 = vmul.f32 %v792, %v226
    %v794 = vmul.f32 %v784, %v784
    %v795 = vmul.f32 %v786, %v786
    %v796 = vadd.f32 %v794, %v795
    %797 = vadd.xlane.f32.xlu0 %v796
    %v798 = vpop.xlane.xlu0 %797
    %v799 = vmul.f32 %v798, %v226
    %v800 = vmul.f32 %v793, %v793
    %v801 = vsub.f32 %v799, %v800
    %v802 = vsub.f32 %v784, %v793
    %v803 = vsub.f32 %v786, %v793
    %v804 = vadd.f32 %v801, 1e-05
    %v805 = vrsqrt.pop %v804
    %v806 = vmul.f32 %v802, %v805
    %v807 = vmul.f32 %v803, %v805
    %v808 = vlaneseq
    %v809 = vshrl.u32 %v808, 7
    %v810 = vsub.s32 0, %v809
    %v811 = vrot.slane %v89, %v810
    %v812 = vlaneseq
    %v813 = vshrl.u32 %v812, 7
    %v814 = vsub.s32 0, %v813
    %v815 = vrot.slane %v90, %v814
    %v816 = vmul.f32 %v806, %v811
    %v817 = vmul.f32 %v807, %v815
    %v818 = vlaneseq
    %v819 = vshrl.u32 %v818, 7
    %v820 = vsub.s32 1, %v819
    %v821 = vrot.slane %v89, %v820
    %v822 = vlaneseq
    %v823 = vshrl.u32 %v822, 7
    %v824 = vsub.s32 1, %v823
    %v825 = vrot.slane %v90, %v824
    %v826 = vadd.f32 %v816, %v821
    %v827 = vadd.f32 %v817, %v825
    %v828 = vmax.f32 %v826, 0.0
    %v829 = vmax.f32 %v827, 0.0
    %v830 = vadd.f32 %v828, %v221
    %v831 = vadd.f32 %v829, %v222
    %v832 = vlaneseq
    %v833 = vshrl.u32 %v832, 7
    %v834 = vsub.s32 2, %v833
    %v835 = vrot.slane %v89, %v834
    %v836 = vlaneseq
    %v837 = vshrl.u32 %v836, 7
    %v838 = vsub.s32 2, %v837
    %v839 = vrot.slane %v90, %v838
    %v840 = vmul.f32 %v830, %v835
    %v841 = vmul.f32 %v831, %v839
    %v842 = vadd.f32 %v840, %v841
    %843 = vadd.xlane.f32.xlu0 %v842
    %v844 = vpop.xlane.xlu0 %843
    %v845 = vlaneseq
    %v846 = vshrl.u32 %v845, 7
    %v847 = vsub.s32 3, %v846
    %v848 = vrot.slane %v89, %v847
    %v849 = vadd.f32 %v844, %v848
    %vm850 = vcmask 7168
    %851 = vst.msk [vmem:[%s5] sm:$0xff] %vm850, %v849
    // Predicated region
    $region42: #{critic_forward.1} parent=1 // pred_check
      _
    $region43: #{critic_forward.1} parent=1 // pred_check_branch
      %853 = sbr.rel (0) target = $region45
    $region44: #{critic_forward.1} parent=1 // pred_region
      _
    $region45: #{critic_forward.1} parent=1 // pred_fallthru
      _
    // Predicated region
    $region46: #{critic_forward.1} parent=1 // pred_check
      _
    $region47: #{critic_forward.1} parent=1 // pred_check_branch
      %855 = sbr.rel (0) target = $region49
    $region48: #{critic_forward.1} parent=1 // pred_region
      _
    $region49: #{critic_forward.1} parent=1 // pred_fallthru
      _
    %856 = vsyncpa [#allocation3], 1
    %857 = vsyncpa [#allocation5], 1
    %858 = vsyncpa [#allocation8], 1

</llo_original>
